<compile_context>
chip_gen: v7x
topology: tpu7x:2x2x1
jax: 0.10.0
libtpu: 0.0.40
codegen_flags: <defaults>
</compile_context>

<pallas_src>
import functools

import jax
import jax.numpy as jnp
from jax.experimental import pallas as pl
from jax.experimental.pallas import tpu as pltpu


def _round_up(x: int, m: int) -> int:
    return ((x + m - 1) // m) * m


def _hidden_tile(n1: int, tj_max: int) -> int:
    """Deterministic hidden-dim tile choice shared by prepare_params and the wrapper."""
    return n1 if n1 <= tj_max else tj_max


# ---------------------------------------------------------------------------
# Fused head+logit kernel:  logits = (x @ W1 + b1) @ W2 + b2
#
# Grid: a single "arbitrary" axis over tiles of the hidden dimension (N1).
# Step j:
#   hidden_j  = x @ W1[:, j_tile] + b1[j_tile]     (f32, never leaves VMEM)
#   acc      += hidden_j.bf16 @ W2[j_tile, :]      (f32 VMEM accumulator)
# acc is seeded with b2 at j == 0 and stored (cast) on the last step.
# ---------------------------------------------------------------------------
def _fused_mlp_kernel(x_ref, w1_ref, b1_ref, w2_ref, b2_ref, o_ref, acc_ref):
    j = pl.program_id(0)

    @pl.when(j == 0)
    def _init():
        # Seed the accumulator with the second Linear's bias: saves a separate
        # epilogue add + bias fetch on the finalize path.
        acc_ref[...] = jnp.broadcast_to(b2_ref[...], acc_ref.shape)

    hidden = (
        jnp.dot(x_ref[...], w1_ref[...], preferred_element_type=jnp.float32)
        + b1_ref[...]
    )
    acc_ref[...] += jnp.dot(
        hidden.astype(w2_ref.dtype), w2_ref[...],
        preferred_element_type=jnp.float32,
    )

    @pl.when(j == pl.num_programs(0) - 1)
    def _finalize():
        o_ref[...] = acc_ref[...].astype(o_ref.dtype)


# ---------------------------------------------------------------------------
# One-time (setup-time) weight preparation -- OUT of the hot path.
# ---------------------------------------------------------------------------
def prepare_params(params, *, tj_max: int = 2048, compute_dtype=jnp.bfloat16):
    """Casts W1/W2 to bf16 and pads once:

    * N1 (hidden) padded to a multiple of the hidden tile,
    * N2 padded to a 128-lane multiple (lane-dense output stores).
    Zero padding is exact: padded hidden columns are zero and multiply zero
    rows of W2; padded logit columns are sliced off before the softmax.
    Use the same `tj_max` when calling the forward.
    """
    w1 = jnp.asarray(params["w_head"])
    b1 = jnp.asarray(params["b_head"]).reshape(1, -1)
    w2 = jnp.asarray(params["w_logit"])
    b2 = jnp.asarray(params["b_logit"]).reshape(1, -1)
    k1, n1 = w1.shape
    n1_, n2 = w2.shape
    assert n1_ == n1 and b1.shape[1] == n1 and b2.shape[1] == n2, (
        w1.shape, w2.shape, b1.shape, b2.shape)

    tj = _hidden_tile(n1, tj_max)
    n1p = _round_up(n1, tj)
    n2p = _round_up(n2, 128)

    return {
        "w1": jnp.pad(w1.astype(compute_dtype), ((0, 0), (0, n1p - n1))),
        "b1": jnp.pad(b1.astype(jnp.float32), ((0, 0), (0, n1p - n1))),
        "w2": jnp.pad(w2.astype(compute_dtype), ((0, n1p - n1), (0, n2p - n2))),
        "b2": jnp.pad(b2.astype(jnp.float32), ((0, 0), (0, n2p - n2))),
    }


# ---------------------------------------------------------------------------
# Fused wrapper: returns the padded (Mp, N2p) logits; caller slices lazily.
# ---------------------------------------------------------------------------
def fused_head_logit(feats, prepared, *, tj_max: int = 2048,
                     out_dtype=jnp.float32, vmem_limit_bytes=None):
    w1, b1, w2, b2 = prepared["w1"], prepared["b1"], prepared["w2"], prepared["b2"]
    m, k1 = feats.shape
    k1w, n1p = w1.shape
    n2p = w2.shape[1]
    assert k1w == k1, (feats.shape, w1.shape)

    tj = _hidden_tile(n1p, tj_max)
    assert n1p % tj == 0 and w2.shape[0] == n1p, (n1p, tj, w2.shape)

    # Sublane-align the (tiny) activation; conditional so it is a no-op when
    # the batch is already a multiple of 8.
    mp = _round_up(m, 8)
    x = feats.astype(w1.dtype)
    if mp != m:
        x = jnp.pad(x, ((0, mp - m), (0, 0)))

    grid = (n1p // tj,)

    out = pl.pallas_call(
        _fused_mlp_kernel,
        out_shape=jax.ShapeDtypeStruct((mp, n2p), out_dtype),
        grid_spec=pltpu.PrefetchScalarGridSpec(
            num_scalar_prefetch=0,
            grid=grid,
            in_specs=[
                pl.BlockSpec((mp, k1), lambda j: (0, 0)),    # x: resident
                pl.BlockSpec((k1, tj), lambda j: (0, j)),    # W1 hidden tile
                pl.BlockSpec((1, tj), lambda j: (0, j)),     # b1 hidden tile
                pl.BlockSpec((tj, n2p), lambda j: (j, 0)),   # W2 hidden tile
                pl.BlockSpec((1, n2p), lambda j: (0, 0)),    # b2: resident
            ],
            out_specs=pl.BlockSpec((mp, n2p), lambda j: (0, 0)),
            scratch_shapes=[pltpu.VMEM((mp, n2p), jnp.float32)],
        ),
        compiler_params=pltpu.CompilerParams(
            # Single reduction axis carrying the accumulator.  The kernel is
            # HBM/DMA-bound at M = batch, so megacore sharding adds no
            # bandwidth; VMEM use (~9 MiB at real shapes) fits the 32 MiB
            # scoped default on v5e/v6e/v7x, so no limit override is needed.
            dimension_semantics=("arbitrary",),
            vmem_limit_bytes=vmem_limit_bytes,
        ),
    )(x, w1, b1, w2, b2)
    return out  # (mp, n2p): caller slices only the columns it consumes.


# ---------------------------------------------------------------------------
# LyftMultiModel.forward equivalent: returns (pred, confidences).
# ---------------------------------------------------------------------------
def lyft_multi_model_forward(prepared, image, *, num_modes, future_len,
                             tj_max: int = 2048):
    B = image.shape[0]
    # TODO(synk): the pretrained ResNet34 conv backbone (conv1/bn1/relu/maxpool,
    # layer1-4, avgpool) is not translated to Pallas; the flattened input stands
    # in for the pooled 512-d backbone feature vector feeding the Linear head.
    feats = image.reshape(B, -1)

    logits = fused_head_logit(feats, prepared, tj_max=tj_max)

    num_preds = num_modes * future_len * 2
    # Slice only what is consumed (skips de-padding when it is a no-op).
    pred = logits[:B, :num_preds].reshape(B, num_modes, future_len, 2)
    confidences = jax.nn.softmax(
        logits[:B, num_preds:num_preds + num_modes], axis=1)
    return pred, confidences


if __name__ == "__main__":
    key = jax.random.PRNGKey(0)
    k_img, k_w1, k_b1, k_w2, k_b2 = jax.random.split(key, 5)

    # Small shapes consistent with the module's forward (real model: 25-channel
    # 350x350 raster -> 512 backbone features, hidden 4096, future_len=50,
    # num_modes=3).  K=1024 here exercises a real contraction.
    B, C, H, W = 2, 4, 16, 16
    hidden_dim = 32
    num_modes, future_len = 3, 8
    num_preds = num_modes * future_len * 2          # 48
    out_dim = num_preds + num_modes                 # 51 (lane-padded to 128 inside)

    image = jax.random.normal(k_img, (B, C, H, W), dtype=jnp.float32)
    D = C * H * W
    params = {
        "w_head": 0.05 * jax.random.normal(k_w1, (D, hidden_dim), jnp.float32),
        "b_head": 0.05 * jax.random.normal(k_b1, (hidden_dim,), jnp.float32),
        "w_logit": 0.05 * jax.random.normal(k_w2, (hidden_dim, out_dim), jnp.float32),
        "b_logit": 0.05 * jax.random.normal(k_b2, (out_dim,), jnp.float32),
    }

    # One-time setup-time weight cast/pad (out of the hot path).
    prepared = prepare_params(params)

    fwd = jax.jit(functools.partial(
        lyft_multi_model_forward, num_modes=num_modes, future_len=future_len))
    pred, confidences = fwd(prepared, image)
    pred, confidences = jax.block_until_ready((pred, confidences))

    # Pure-JAX reference with identical bf16-operand / f32-accumulate numerics.
    feats = image.reshape(B, -1)
    h_ref = (
        jnp.dot(feats.astype(jnp.bfloat16), params["w_head"].astype(jnp.bfloat16),
                preferred_element_type=jnp.float32)
        + params["b_head"]
    )
    logits_ref = (
        jnp.dot(h_ref.astype(jnp.bfloat16), params["w_logit"].astype(jnp.bfloat16),
                preferred_element_type=jnp.float32)
        + params["b_logit"]
    )
    pred_ref = logits_ref[:, :num_preds].reshape(B, num_modes, future_len, 2)
    conf_ref = jax.nn.softmax(logits_ref[:, num_preds:], axis=1)

    assert pred.shape == (B, num_modes, future_len, 2)
    assert confidences.shape == (B, num_modes)
    assert bool(jnp.all(jnp.isfinite(pred)))
    assert bool(jnp.all(jnp.isfinite(confidences)))
    assert jnp.allclose(jnp.sum(confidences, axis=1), 1.0, atol=1e-5)
    assert jnp.allclose(pred, pred_ref, rtol=5e-3, atol=5e-3), (
        float(jnp.max(jnp.abs(pred - pred_ref))))
    assert jnp.allclose(confidences, conf_ref, rtol=5e-3, atol=5e-3), (
        float(jnp.max(jnp.abs(confidences - conf_ref))))
    print("KERNEL_OK")
</pallas_src>

<mosaic_0001>
module attributes {stable_mosaic.version = 11 : i64} {
  func.func @_fused_mlp_kernel(%arg0: i32, %arg1: memref<8x1024xbf16, #tpu.memory_space<vmem>>, %arg2: memref<1024x32xbf16, #tpu.memory_space<vmem>>, %arg3: memref<1x32xf32, #tpu.memory_space<vmem>>, %arg4: memref<32x128xbf16, #tpu.memory_space<vmem>>, %arg5: memref<1x128xf32, #tpu.memory_space<vmem>>, %arg6: memref<8x128xf32, #tpu.memory_space<vmem>>, %arg7: memref<8x128xf32, #tpu.memory_space<vmem>>) attributes {dimension_semantics = [#tpu.dimension_semantics<arbitrary>], iteration_bounds = array<i64: 1>, scalar_prefetch = 0 : i64, scratch_operands = 1 : i64, tpu.core_type = #tpu.core_type<tc>, window_params = [{pipeline_mode = #tpu.pipeline_mode<synchronous>, transform_indices = @transform_0, window_bounds = array<i64: 8, 1024>}, {transform_indices = @transform_1, window_bounds = array<i64: 1024, 32>}, {transform_indices = @transform_2, window_bounds = array<i64: 1, 32>}, {transform_indices = @transform_3, window_bounds = array<i64: 32, 128>}, {pipeline_mode = #tpu.pipeline_mode<synchronous>, transform_indices = @transform_4, window_bounds = array<i64: 1, 128>}, {pipeline_mode = #tpu.pipeline_mode<synchronous>, transform_indices = @transform_5, window_bounds = array<i64: 8, 128>}]} {
    %c0_i32 = arith.constant 0 : i32
    %0 = arith.cmpi eq, %arg0, %c0_i32 : i32
    %1 = arith.extui %0 : i1 to i32
    %c0_i32_0 = arith.constant 0 : i32
    %2 = arith.cmpi ne, %1, %c0_i32_0 : i32
    scf.if %2 {
      %c0_15 = arith.constant 0 : index
      %c0_16 = arith.constant 0 : index
      %18 = vector.load %arg5[%c0_15, %c0_16] : memref<1x128xf32, #tpu.memory_space<vmem>>, vector<1x128xf32>
      %19 = vector.shape_cast %18 : vector<1x128xf32> to vector<1x128xf32>
      %20 = vector.broadcast %19 : vector<1x128xf32> to vector<8x128xf32>
      %c0_17 = arith.constant 0 : index
      %c0_18 = arith.constant 0 : index
      %21 = vector.load %arg7[%c0_17, %c0_18] : memref<8x128xf32, #tpu.memory_space<vmem>>, vector<8x128xf32>
      tpu.vector_store %arg7[%c0_17, %c0_18], %20 {strides = array<i32>} : memref<8x128xf32, #tpu.memory_space<vmem>>, vector<8x128xf32>,
    } else {
    }
    %c0 = arith.constant 0 : index
    %c0_1 = arith.constant 0 : index
    %3 = vector.load %arg1[%c0, %c0_1] : memref<8x1024xbf16, #tpu.memory_space<vmem>>, vector<8x1024xbf16>
    %c0_2 = arith.constant 0 : index
    %c0_3 = arith.constant 0 : index
    %4 = vector.load %arg2[%c0_2, %c0_3] : memref<1024x32xbf16, #tpu.memory_space<vmem>>, vector<1024x32xbf16>
    %cst = arith.constant dense<0.000000e+00> : vector<8x32xf32>
    %5 = tpu.matmul %3, %4, %cst {dimension_numbers = #tpu.dot_dimension_numbers<[1], [0], [0], [1], [0, 0, 1, 1], [], []>} : vector<8x1024xbf16>, vector<1024x32xbf16>, vector<8x32xf32> -> vector<8x32xf32>
    %c0_4 = arith.constant 0 : index
    %c0_5 = arith.constant 0 : index
    %6 = vector.load %arg3[%c0_4, %c0_5] : memref<1x32xf32, #tpu.memory_space<vmem>>, vector<1x32xf32>
    %7 = vector.broadcast %6 : vector<1x32xf32> to vector<8x32xf32>
    %8 = arith.addf %5, %7 : vector<8x32xf32>
    %c0_6 = arith.constant 0 : index
    %c0_7 = arith.constant 0 : index
    %9 = vector.load %arg7[%c0_6, %c0_7] : memref<8x128xf32, #tpu.memory_space<vmem>>, vector<8x128xf32>
    %10 = arith.truncf %8 : vector<8x32xf32> to vector<8x32xbf16>
    %c0_8 = arith.constant 0 : index
    %c0_9 = arith.constant 0 : index
    %11 = vector.load %arg4[%c0_8, %c0_9] : memref<32x128xbf16, #tpu.memory_space<vmem>>, vector<32x128xbf16>
    %cst_10 = arith.constant dense<0.000000e+00> : vector<8x128xf32>
    %12 = tpu.matmul %10, %11, %cst_10 {dimension_numbers = #tpu.dot_dimension_numbers<[1], [0], [0], [1], [0, 0, 1, 1], [], []>} : vector<8x32xbf16>, vector<32x128xbf16>, vector<8x128xf32> -> vector<8x128xf32>
    %13 = arith.addf %9, %12 : vector<8x128xf32>
    %c0_11 = arith.constant 0 : index
    %c0_12 = arith.constant 0 : index
    %14 = vector.load %arg7[%c0_11, %c0_12] : memref<8x128xf32, #tpu.memory_space<vmem>>, vector<8x128xf32>
    tpu.vector_store %arg7[%c0_11, %c0_12], %13 {strides = array<i32>} : memref<8x128xf32, #tpu.memory_space<vmem>>, vector<8x128xf32>,
    %c0_i32_13 = arith.constant 0 : i32
    %15 = arith.cmpi eq, %arg0, %c0_i32_13 : i32
    %16 = arith.extui %15 : i1 to i32
    %c0_i32_14 = arith.constant 0 : i32
    %17 = arith.cmpi ne, %16, %c0_i32_14 : i32
    scf.if %17 {
      %c0_15 = arith.constant 0 : index
      %c0_16 = arith.constant 0 : index
      %18 = vector.load %arg7[%c0_15, %c0_16] : memref<8x128xf32, #tpu.memory_space<vmem>>, vector<8x128xf32>
      %c0_17 = arith.constant 0 : index
      %c0_18 = arith.constant 0 : index
      %19 = vector.load %arg6[%c0_17, %c0_18] : memref<8x128xf32, #tpu.memory_space<vmem>>, vector<8x128xf32>
      tpu.vector_store %arg6[%c0_17, %c0_18], %18 {strides = array<i32>} : memref<8x128xf32, #tpu.memory_space<vmem>>, vector<8x128xf32>,
    } else {
    }
    return
  }
  func.func @transform_0(%arg0: i32) -> (i32, i32) {
    %c0_i32 = arith.constant 0 : i32
    %c0_i32_0 = arith.constant 0 : i32
    %c0_i32_1 = arith.constant 0 : i32
    return %c0_i32, %c0_i32_0 : i32, i32
  }
  func.func @transform_1(%arg0: i32) -> (i32, i32) {
    %c0_i32 = arith.constant 0 : i32
    %c0_i32_0 = arith.constant 0 : i32
    return %c0_i32, %arg0 : i32, i32
  }
  func.func @transform_2(%arg0: i32) -> (i32, i32) {
    %c0_i32 = arith.constant 0 : i32
    %c0_i32_0 = arith.constant 0 : i32
    return %c0_i32, %arg0 : i32, i32
  }
  func.func @transform_3(%arg0: i32) -> (i32, i32) {
    %c0_i32 = arith.constant 0 : i32
    %c0_i32_0 = arith.constant 0 : i32
    return %arg0, %c0_i32 : i32, i32
  }
  func.func @transform_4(%arg0: i32) -> (i32, i32) {
    %c0_i32 = arith.constant 0 : i32
    %c0_i32_0 = arith.constant 0 : i32
    %c0_i32_1 = arith.constant 0 : i32
    return %c0_i32, %c0_i32_0 : i32, i32
  }
  func.func @transform_5(%arg0: i32) -> (i32, i32) {
    %c0_i32 = arith.constant 0 : i32
    %c0_i32_0 = arith.constant 0 : i32
    %c0_i32_1 = arith.constant 0 : i32
    return %c0_i32, %c0_i32_0 : i32, i32
  }
}

</mosaic_0001>

<llo_original>
// kernel: lyft_multi_model_forward.1
$region0: #{lyft_multi_model_forward.1}
  #allocation0 [shape = 'u32[]', space=smem, size = 0x4, offset = 0x4, fixed_abs, tag = 'smem constant byte address 0x4 - core index']
  #allocation1 [shape = 'u32[144,128]{1,0:T(1,128)}', space=vmem, size = 0x12000, scoped, tag = 'internal scratch']
  #allocation2 [shape = 'f32[8,128]{1,0:T(8,128)}', space=vmem, size = 0x1000, scoped, tag = 'scratch operand']
  %s0 = inlined_call_operand.vmem [shape: bf16[8,1024], index: 0, kind: input, shape index: {}]
  %s1 = inlined_call_operand.vmem [shape: bf16[1024,32], index: 1, kind: input, shape index: {}]
  %s2 = inlined_call_operand.vmem [shape: f32[1,32], index: 2, kind: input, shape index: {}]
  %s3 = inlined_call_operand.vmem [shape: bf16[32,128], index: 3, kind: input, shape index: {}]
  %s4 = inlined_call_operand.vmem [shape: f32[1,128], index: 4, kind: input, shape index: {}]
  %s5 = inlined_call_operand.vmem [shape: f32[8,128], index: 5, kind: output, shape index: {}]
  %s6 = sld [smem:[#allocation0]]
  $region38: #{lyft_multi_model_forward.1} parent=0
    _
  %s8 = ssub.s32 1, %s6
  %s9 = scalar_select 0, %s8, %s6
  // Predicated region
  $region2: #{lyft_multi_model_forward.1} parent=0 // pred_check
    _
  $region3: #{lyft_multi_model_forward.1} parent=0 // pred_check_branch
    %11 = sbr.rel (0) target = $region5
  $region4: #{lyft_multi_model_forward.1} parent=0 // pred_region
    _
  $region5: #{lyft_multi_model_forward.1} parent=0 // pred_fallthru
    _
  // Predicated region
  $region6: #{lyft_multi_model_forward.1} parent=0 // pred_check
    _
  $region7: #{lyft_multi_model_forward.1} parent=0 // pred_check_branch
    %13 = sbr.rel (0) target = $region9
  $region8: #{lyft_multi_model_forward.1} parent=0 // pred_region
    _
  $region9: #{lyft_multi_model_forward.1} parent=0 // pred_fallthru
    _
  // Predicated region
  $region10: #{lyft_multi_model_forward.1} parent=0 // pred_check
    _
  $region11: #{lyft_multi_model_forward.1} parent=0 // pred_check_branch
    %15 = sbr.rel (0) target = $region13
  $region12: #{lyft_multi_model_forward.1} parent=0 // pred_region
    _
  $region13: #{lyft_multi_model_forward.1} parent=0 // pred_fallthru
    _
  // Predicated region
  $region14: #{lyft_multi_model_forward.1} parent=0 // pred_check
    _
  $region15: #{lyft_multi_model_forward.1} parent=0 // pred_check_branch
    %17 = sbr.rel (0) target = $region17
  $region16: #{lyft_multi_model_forward.1} parent=0 // pred_region
    _
  $region17: #{lyft_multi_model_forward.1} parent=0 // pred_fallthru
    _
  // Predicated region
  $region18: #{lyft_multi_model_forward.1} parent=0 // pred_check
    _
  $region19: #{lyft_multi_model_forward.1} parent=0 // pred_check_branch
    %19 = sbr.rel (0) target = $region21
  $region20: #{lyft_multi_model_forward.1} parent=0 // pred_region
    _
  $region21: #{lyft_multi_model_forward.1} parent=0 // pred_fallthru
    _
  %p21 = scmp.eq.s32.totalorder 0, 0
  // Predicated region
  $region22: #{lyft_multi_model_forward.1} parent=0 // pred_check
    %p22 = pneg %p21
  $region23: #{lyft_multi_model_forward.1} parent=0 // pred_check_branch
    %24 = sbr.rel (%p22) target = $region25
  $region24: #{lyft_multi_model_forward.1} parent=0 // pred_region
    %v25 = vld [vmem:[%s4] sm:$0x1]
    %v27 = vlaneseq
    %v28 = vshrl.u32 %v27, 7
    %v29 = vsub.s32 0, %v28
    %v30 = vrot.slane %v25, %v29
    %32 = vst [vmem:[#allocation2] sm:$0xff] %v30
  $region25: #{lyft_multi_model_forward.1} parent=0 // pred_fallthru
    _
  %v33 = vld [vmem:[%s0] sm:$0xff]
  %v34 = vld [vmem:[%s0 + $0x8] sm:$0xff]
  %v35 = vld [vmem:[%s0 + $0x10] sm:$0xff]
  %v36 = vld [vmem:[%s0 + $0x18] sm:$0xff]
  %v37 = vld [vmem:[%s1] sm:$0xf]
  %v38 = vld [vmem:[%s1 + $0x4] sm:$0xf]
  %v39 = vld [vmem:[%s1 + $0x8] sm:$0xf]
  %v40 = vld [vmem:[%s1 + $0xc] sm:$0xf]
  %v41 = vld [vmem:[%s1 + $0x10] sm:$0xf]
  %v42 = vld [vmem:[%s1 + $0x14] sm:$0xf]
  %v43 = vld [vmem:[%s1 + $0x18] sm:$0xf]
  %v44 = vld [vmem:[%s1 + $0x1c] sm:$0xf]
  %v45 = vld [vmem:[%s1 + $0x20] sm:$0xf]
  %v46 = vld [vmem:[%s1 + $0x24] sm:$0xf]
  %v47 = vld [vmem:[%s1 + $0x28] sm:$0xf]
  %v48 = vld [vmem:[%s1 + $0x2c] sm:$0xf]
  %v49 = vld [vmem:[%s1 + $0x30] sm:$0xf]
  %v50 = vld [vmem:[%s1 + $0x34] sm:$0xf]
  %v51 = vld [vmem:[%s1 + $0x38] sm:$0xf]
  %v52 = vld [vmem:[%s1 + $0x3c] sm:$0xf]
  %v53 = vld [vmem:[%s1 + $0x40] sm:$0xf]
  %v54 = vld [vmem:[%s1 + $0x44] sm:$0xf]
  %v55 = vld [vmem:[%s1 + $0x48] sm:$0xf]
  %v56 = vld [vmem:[%s1 + $0x4c] sm:$0xf]
  %v57 = vld [vmem:[%s1 + $0x50] sm:$0xf]
  %v58 = vld [vmem:[%s1 + $0x54] sm:$0xf]
  %v59 = vld [vmem:[%s1 + $0x58] sm:$0xf]
  %v60 = vld [vmem:[%s1 + $0x5c] sm:$0xf]
  %v61 = vld [vmem:[%s1 + $0x60] sm:$0xf]
  %v62 = vld [vmem:[%s1 + $0x64] sm:$0xf]
  %v63 = vld [vmem:[%s1 + $0x68] sm:$0xf]
  %v64 = vld [vmem:[%s1 + $0x6c] sm:$0xf]
  %v65 = vld [vmem:[%s1 + $0x70] sm:$0xf]
  %v66 = vld [vmem:[%s1 + $0x74] sm:$0xf]
  %v67 = vld [vmem:[%s1 + $0x78] sm:$0xf]
  %v68 = vld [vmem:[%s1 + $0x7c] sm:$0xf]
  %v69 = vld [vmem:[%s1 + $0x80] sm:$0xf]
  %v70 = vld [vmem:[%s1 + $0x84] sm:$0xf]
  %v71 = vld [vmem:[%s1 + $0x88] sm:$0xf]
  %v72 = vld [vmem:[%s1 + $0x8c] sm:$0xf]
  %v73 = vld [vmem:[%s1 + $0x90] sm:$0xf]
  %v74 = vld [vmem:[%s1 + $0x94] sm:$0xf]
  %v75 = vld [vmem:[%s1 + $0x98] sm:$0xf]
  %v76 = vld [vmem:[%s1 + $0x9c] sm:$0xf]
  %v77 = vld [vmem:[%s1 + $0xa0] sm:$0xf]
  %v78 = vld [vmem:[%s1 + $0xa4] sm:$0xf]
  %v79 = vld [vmem:[%s1 + $0xa8] sm:$0xf]
  %v80 = vld [vmem:[%s1 + $0xac] sm:$0xf]
  %v81 = vld [vmem:[%s1 + $0xb0] sm:$0xf]
  %v82 = vld [vmem:[%s1 + $0xb4] sm:$0xf]
  %v83 = vld [vmem:[%s1 + $0xb8] sm:$0xf]
  %v84 = vld [vmem:[%s1 + $0xbc] sm:$0xf]
  %v85 = vld [vmem:[%s1 + $0xc0] sm:$0xf]
  %v86 = vld [vmem:[%s1 + $0xc4] sm:$0xf]
  %v87 = vld [vmem:[%s1 + $0xc8] sm:$0xf]
  %v88 = vld [vmem:[%s1 + $0xcc] sm:$0xf]
  %v89 = vld [vmem:[%s1 + $0xd0] sm:$0xf]
  %v90 = vld [vmem:[%s1 + $0xd4] sm:$0xf]
  %v91 = vld [vmem:[%s1 + $0xd8] sm:$0xf]
  %v92 = vld [vmem:[%s1 + $0xdc] sm:$0xf]
  %v93 = vld [vmem:[%s1 + $0xe0] sm:$0xf]
  %v94 = vld [vmem:[%s1 + $0xe4] sm:$0xf]
  %v95 = vld [vmem:[%s1 + $0xe8] sm:$0xf]
  %v96 = vld [vmem:[%s1 + $0xec] sm:$0xf]
  %v97 = vld [vmem:[%s1 + $0xf0] sm:$0xf]
  %v98 = vld [vmem:[%s1 + $0xf4] sm:$0xf]
  %v99 = vld [vmem:[%s1 + $0xf8] sm:$0xf]
  %v100 = vld [vmem:[%s1 + $0xfc] sm:$0xf]
  %v101 = vld [vmem:[%s1 + $0x100] sm:$0xf]
  %v102 = vld [vmem:[%s1 + $0x104] sm:$0xf]
  %v103 = vld [vmem:[%s1 + $0x108] sm:$0xf]
  %v104 = vld [vmem:[%s1 + $0x10c] sm:$0xf]
  %v105 = vld [vmem:[%s1 + $0x110] sm:$0xf]
  %v106 = vld [vmem:[%s1 + $0x114] sm:$0xf]
  %v107 = vld [vmem:[%s1 + $0x118] sm:$0xf]
  %v108 = vld [vmem:[%s1 + $0x11c] sm:$0xf]
  %v109 = vld [vmem:[%s1 + $0x120] sm:$0xf]
  %v110 = vld [vmem:[%s1 + $0x124] sm:$0xf]
  %v111 = vld [vmem:[%s1 + $0x128] sm:$0xf]
  %v112 = vld [vmem:[%s1 + $0x12c] sm:$0xf]
  %v113 = vld [vmem:[%s1 + $0x130] sm:$0xf]
  %v114 = vld [vmem:[%s1 + $0x134] sm:$0xf]
  %v115 = vld [vmem:[%s1 + $0x138] sm:$0xf]
  %v116 = vld [vmem:[%s1 + $0x13c] sm:$0xf]
  %v117 = vld [vmem:[%s1 + $0x140] sm:$0xf]
  %v118 = vld [vmem:[%s1 + $0x144] sm:$0xf]
  %v119 = vld [vmem:[%s1 + $0x148] sm:$0xf]
  %v120 = vld [vmem:[%s1 + $0x14c] sm:$0xf]
  %v121 = vld [vmem:[%s1 + $0x150] sm:$0xf]
  %v122 = vld [vmem:[%s1 + $0x154] sm:$0xf]
  %v123 = vld [vmem:[%s1 + $0x158] sm:$0xf]
  %v124 = vld [vmem:[%s1 + $0x15c] sm:$0xf]
  %v125 = vld [vmem:[%s1 + $0x160] sm:$0xf]
  %v126 = vld [vmem:[%s1 + $0x164] sm:$0xf]
  %v127 = vld [vmem:[%s1 + $0x168] sm:$0xf]
  %v128 = vld [vmem:[%s1 + $0x16c] sm:$0xf]
  %v129 = vld [vmem:[%s1 + $0x170] sm:$0xf]
  %v130 = vld [vmem:[%s1 + $0x174] sm:$0xf]
  %v131 = vld [vmem:[%s1 + $0x178] sm:$0xf]
  %v132 = vld [vmem:[%s1 + $0x17c] sm:$0xf]
  %v133 = vld [vmem:[%s1 + $0x180] sm:$0xf]
  %v134 = vld [vmem:[%s1 + $0x184] sm:$0xf]
  %v135 = vld [vmem:[%s1 + $0x188] sm:$0xf]
  %v136 = vld [vmem:[%s1 + $0x18c] sm:$0xf]
  %v137 = vld [vmem:[%s1 + $0x190] sm:$0xf]
  %v138 = vld [vmem:[%s1 + $0x194] sm:$0xf]
  %v139 = vld [vmem:[%s1 + $0x198] sm:$0xf]
  %v140 = vld [vmem:[%s1 + $0x19c] sm:$0xf]
  %v141 = vld [vmem:[%s1 + $0x1a0] sm:$0xf]
  %v142 = vld [vmem:[%s1 + $0x1a4] sm:$0xf]
  %v143 = vld [vmem:[%s1 + $0x1a8] sm:$0xf]
  %v144 = vld [vmem:[%s1 + $0x1ac] sm:$0xf]
  %v145 = vld [vmem:[%s1 + $0x1b0] sm:$0xf]
  %v146 = vld [vmem:[%s1 + $0x1b4] sm:$0xf]
  %v147 = vld [vmem:[%s1 + $0x1b8] sm:$0xf]
  %v148 = vld [vmem:[%s1 + $0x1bc] sm:$0xf]
  %v149 = vld [vmem:[%s1 + $0x1c0] sm:$0xf]
  %v150 = vld [vmem:[%s1 + $0x1c4] sm:$0xf]
  %v151 = vld [vmem:[%s1 + $0x1c8] sm:$0xf]
  %v152 = vld [vmem:[%s1 + $0x1cc] sm:$0xf]
  %v153 = vld [vmem:[%s1 + $0x1d0] sm:$0xf]
  %v154 = vld [vmem:[%s1 + $0x1d4] sm:$0xf]
  %v155 = vld [vmem:[%s1 + $0x1d8] sm:$0xf]
  %v156 = vld [vmem:[%s1 + $0x1dc] sm:$0xf]
  %v157 = vld [vmem:[%s1 + $0x1e0] sm:$0xf]
  %v158 = vld [vmem:[%s1 + $0x1e4] sm:$0xf]
  %v159 = vld [vmem:[%s1 + $0x1e8] sm:$0xf]
  %v160 = vld [vmem:[%s1 + $0x1ec] sm:$0xf]
  %v161 = vld [vmem:[%s1 + $0x1f0] sm:$0xf]
  %v162 = vld [vmem:[%s1 + $0x1f4] sm:$0xf]
  %v163 = vld [vmem:[%s1 + $0x1f8] sm:$0xf]
  %v164 = vld [vmem:[%s1 + $0x1fc] sm:$0xf]
  %v165 = vld [vmem:[%s2] sm:$0x1]
  %v167 = vlaneseq
  %v168 = vshrl.u32 %v167, 7
  %v169 = vsub.s32 0, %v168
  %v170 = vrot.slane %v165, %v169
  %v176 = vunpack.c.l.b16 %v33
  %v177 = vunpack.c.h.b16 %v33
  %v178 = vunpack.c.l.b16 %v34
  %v179 = vunpack.c.h.b16 %v34
  %v180 = vunpack.c.l.b16 %v35
  %v181 = vunpack.c.h.b16 %v35
  %v182 = vunpack.c.l.b16 %v36
  %v183 = vunpack.c.h.b16 %v36
  %v184 = vpack.c.b16 %v176, %v176
  %v185 = vpack.c.b16 %v177, %v177
  %v186 = vpack.c.b16 %v178, %v178
  %v187 = vpack.c.b16 %v179, %v179
  %v188 = vpack.c.b16 %v180, %v180
  %v189 = vpack.c.b16 %v181, %v181
  %v190 = vpack.c.b16 %v182, %v182
  %v191 = vpack.c.b16 %v183, %v183
  %v328 = vunpack.c.l.b16 %v37
  %v329 = vunpack.c.l.b16 %v38
  %v330 = vunpack.c.l.b16 %v39
  %v331 = vunpack.c.l.b16 %v40
  %v332 = vunpack.c.l.b16 %v41
  %v333 = vunpack.c.l.b16 %v42
  %v334 = vunpack.c.l.b16 %v43
  %v335 = vunpack.c.l.b16 %v44
  %v336 = vunpack.c.l.b16 %v45
  %v337 = vunpack.c.l.b16 %v46
  %v338 = vunpack.c.l.b16 %v47
  %v339 = vunpack.c.l.b16 %v48
  %v340 = vunpack.c.l.b16 %v49
  %v341 = vunpack.c.l.b16 %v50
  %v342 = vunpack.c.l.b16 %v51
  %v343 = vunpack.c.l.b16 %v52
  %v344 = vunpack.c.l.b16 %v53
  %v345 = vunpack.c.l.b16 %v54
  %v346 = vunpack.c.l.b16 %v55
  %v347 = vunpack.c.l.b16 %v56
  %v348 = vunpack.c.l.b16 %v57
  %v349 = vunpack.c.l.b16 %v58
  %v350 = vunpack.c.l.b16 %v59
  %v351 = vunpack.c.l.b16 %v60
  %v352 = vunpack.c.l.b16 %v61
  %v353 = vunpack.c.l.b16 %v62
  %v354 = vunpack.c.l.b16 %v63
  %v355 = vunpack.c.l.b16 %v64
  %v356 = vunpack.c.l.b16 %v65
  %v357 = vunpack.c.l.b16 %v66
  %v358 = vunpack.c.l.b16 %v67
  %v359 = vunpack.c.l.b16 %v68
  %v360 = vunpack.c.l.b16 %v69
  %v361 = vunpack.c.l.b16 %v70
  %v362 = vunpack.c.l.b16 %v71
  %v363 = vunpack.c.l.b16 %v72
  %v364 = vunpack.c.l.b16 %v73
  %v365 = vunpack.c.l.b16 %v74
  %v366 = vunpack.c.l.b16 %v75
  %v367 = vunpack.c.l.b16 %v76
  %v368 = vunpack.c.l.b16 %v77
  %v369 = vunpack.c.l.b16 %v78
  %v370 = vunpack.c.l.b16 %v79
  %v371 = vunpack.c.l.b16 %v80
  %v372 = vunpack.c.l.b16 %v81
  %v373 = vunpack.c.l.b16 %v82
  %v374 = vunpack.c.l.b16 %v83
  %v375 = vunpack.c.l.b16 %v84
  %v376 = vunpack.c.l.b16 %v85
  %v377 = vunpack.c.l.b16 %v86
  %v378 = vunpack.c.l.b16 %v87
  %v379 = vunpack.c.l.b16 %v88
  %v380 = vunpack.c.l.b16 %v89
  %v381 = vunpack.c.l.b16 %v90
  %v382 = vunpack.c.l.b16 %v91
  %v383 = vunpack.c.l.b16 %v92
  %v384 = vunpack.c.l.b16 %v93
  %v385 = vunpack.c.l.b16 %v94
  %v386 = vunpack.c.l.b16 %v95
  %v387 = vunpack.c.l.b16 %v96
  %v388 = vunpack.c.l.b16 %v97
  %v389 = vunpack.c.l.b16 %v98
  %v390 = vunpack.c.l.b16 %v99
  %v391 = vunpack.c.l.b16 %v100
  %v392 = vunpack.c.l.b16 %v101
  %v393 = vunpack.c.l.b16 %v102
  %v394 = vunpack.c.l.b16 %v103
  %v395 = vunpack.c.l.b16 %v104
  %v396 = vunpack.c.l.b16 %v105
  %v397 = vunpack.c.l.b16 %v106
  %v398 = vunpack.c.l.b16 %v107
  %v399 = vunpack.c.l.b16 %v108
  %v400 = vunpack.c.l.b16 %v109
  %v401 = vunpack.c.l.b16 %v110
  %v402 = vunpack.c.l.b16 %v111
  %v403 = vunpack.c.l.b16 %v112
  %v404 = vunpack.c.l.b16 %v113
  %v405 = vunpack.c.l.b16 %v114
  %v406 = vunpack.c.l.b16 %v115
  %v407 = vunpack.c.l.b16 %v116
  %v408 = vunpack.c.l.b16 %v117
  %v409 = vunpack.c.l.b16 %v118
  %v410 = vunpack.c.l.b16 %v119
  %v411 = vunpack.c.l.b16 %v120
  %v412 = vunpack.c.l.b16 %v121
  %v413 = vunpack.c.l.b16 %v122
  %v414 = vunpack.c.l.b16 %v123
  %v415 = vunpack.c.l.b16 %v124
  %v416 = vunpack.c.l.b16 %v125
  %v417 = vunpack.c.l.b16 %v126
  %v418 = vunpack.c.l.b16 %v127
  %v419 = vunpack.c.l.b16 %v128
  %v420 = vunpack.c.l.b16 %v129
  %v421 = vunpack.c.l.b16 %v130
  %v422 = vunpack.c.l.b16 %v131
  %v423 = vunpack.c.l.b16 %v132
  %v424 = vunpack.c.l.b16 %v133
  %v425 = vunpack.c.l.b16 %v134
  %v426 = vunpack.c.l.b16 %v135
  %v427 = vunpack.c.l.b16 %v136
  %v428 = vunpack.c.l.b16 %v137
  %v429 = vunpack.c.l.b16 %v138
  %v430 = vunpack.c.l.b16 %v139
  %v431 = vunpack.c.l.b16 %v140
  %v432 = vunpack.c.l.b16 %v141
  %v433 = vunpack.c.l.b16 %v142
  %v434 = vunpack.c.l.b16 %v143
  %v435 = vunpack.c.l.b16 %v144
  %v436 = vunpack.c.l.b16 %v145
  %v437 = vunpack.c.l.b16 %v146
  %v438 = vunpack.c.l.b16 %v147
  %v439 = vunpack.c.l.b16 %v148
  %v440 = vunpack.c.l.b16 %v149
  %v441 = vunpack.c.l.b16 %v150
  %v442 = vunpack.c.l.b16 %v151
  %v443 = vunpack.c.l.b16 %v152
  %v444 = vunpack.c.l.b16 %v153
  %v445 = vunpack.c.l.b16 %v154
  %v446 = vunpack.c.l.b16 %v155
  %v447 = vunpack.c.l.b16 %v156
  %v448 = vunpack.c.l.b16 %v157
  %v449 = vunpack.c.l.b16 %v158
  %v450 = vunpack.c.l.b16 %v159
  %v451 = vunpack.c.l.b16 %v160
  %v452 = vunpack.c.l.b16 %v161
  %v453 = vunpack.c.l.b16 %v162
  %v454 = vunpack.c.l.b16 %v163
  %v455 = vunpack.c.l.b16 %v164
  %v456 = vpack.c.b16 %v329, %v328
  %v457 = vpack.c.b16 %v331, %v330
  %v458 = vpack.c.b16 %v333, %v332
  %v459 = vpack.c.b16 %v335, %v334
  %v460 = vpack.c.b16 %v337, %v336
  %v461 = vpack.c.b16 %v339, %v338
  %v462 = vpack.c.b16 %v341, %v340
  %v463 = vpack.c.b16 %v343, %v342
  %v464 = vpack.c.b16 %v345, %v344
  %v465 = vpack.c.b16 %v347, %v346
  %v466 = vpack.c.b16 %v349, %v348
  %v467 = vpack.c.b16 %v351, %v350
  %v468 = vpack.c.b16 %v353, %v352
  %v469 = vpack.c.b16 %v355, %v354
  %v470 = vpack.c.b16 %v357, %v356
  %v471 = vpack.c.b16 %v359, %v358
  %v472 = vpack.c.b16 %v361, %v360
  %v473 = vpack.c.b16 %v363, %v362
  %v474 = vpack.c.b16 %v365, %v364
  %v475 = vpack.c.b16 %v367, %v366
  %v476 = vpack.c.b16 %v369, %v368
  %v477 = vpack.c.b16 %v371, %v370
  %v478 = vpack.c.b16 %v373, %v372
  %v479 = vpack.c.b16 %v375, %v374
  %v480 = vpack.c.b16 %v377, %v376
  %v481 = vpack.c.b16 %v379, %v378
  %v482 = vpack.c.b16 %v381, %v380
  %v483 = vpack.c.b16 %v383, %v382
  %v484 = vpack.c.b16 %v385, %v384
  %v485 = vpack.c.b16 %v387, %v386
  %v486 = vpack.c.b16 %v389, %v388
  %v487 = vpack.c.b16 %v391, %v390
  %v488 = vpack.c.b16 %v393, %v392
  %v489 = vpack.c.b16 %v395, %v394
  %v490 = vpack.c.b16 %v397, %v396
  %v491 = vpack.c.b16 %v399, %v398
  %v492 = vpack.c.b16 %v401, %v400
  %v493 = vpack.c.b16 %v403, %v402
  %v494 = vpack.c.b16 %v405, %v404
  %v495 = vpack.c.b16 %v407, %v406
  %v496 = vpack.c.b16 %v409, %v408
  %v497 = vpack.c.b16 %v411, %v410
  %v498 = vpack.c.b16 %v413, %v412
  %v499 = vpack.c.b16 %v415, %v414
  %v500 = vpack.c.b16 %v417, %v416
  %v501 = vpack.c.b16 %v419, %v418
  %v502 = vpack.c.b16 %v421, %v420
  %v503 = vpack.c.b16 %v423, %v422
  %v504 = vpack.c.b16 %v425, %v424
  %v505 = vpack.c.b16 %v427, %v426
  %v506 = vpack.c.b16 %v429, %v428
  %v507 = vpack.c.b16 %v431, %v430
  %v508 = vpack.c.b16 %v433, %v432
  %v509 = vpack.c.b16 %v435, %v434
  %v510 = vpack.c.b16 %v437, %v436
  %v511 = vpack.c.b16 %v439, %v438
  %v512 = vpack.c.b16 %v441, %v440
  %v513 = vpack.c.b16 %v443, %v442
  %v514 = vpack.c.b16 %v445, %v444
  %v515 = vpack.c.b16 %v447, %v446
  %v516 = vpack.c.b16 %v449, %v448
  %v517 = vpack.c.b16 %v451, %v450
  %v518 = vpack.c.b16 %v453, %v452
  %v519 = vpack.c.b16 %v455, %v454
  %584 = vmatprep.subr.bf16.mxu0 0
  %585 = vmatpush1.bf16.msra.mxu0 %v456
  %586 = vmatprep.subr.bf16.mxu0 0
  %587 = vmatpush1.bf16.msra.mxu0 %v457
  %588 = vmatprep.subr.bf16.mxu0 0
  %589 = vmatpush1.bf16.msra.mxu0 %v458
  %590 = vmatprep.subr.bf16.mxu0 0
  %591 = vmatpush1.bf16.msra.mxu0 %v459
  %592 = vmatprep.subr.bf16.mxu0 0
  %593 = vmatpush1.bf16.msra.mxu0 %v460
  %594 = vmatprep.subr.bf16.mxu0 0
  %595 = vmatpush1.bf16.msra.mxu0 %v461
  %596 = vmatprep.subr.bf16.mxu0 0
  %597 = vmatpush1.bf16.msra.mxu0 %v462
  %598 = vmatprep.subr.bf16.mxu0 0
  %599 = vmatpush1.bf16.msra.mxu0 %v463
  %600 = vmatprep.subr.bf16.mxu0 0
  %601 = vmatpush1.bf16.msra.mxu0 %v464
  %602 = vmatprep.subr.bf16.mxu0 0
  %603 = vmatpush1.bf16.msra.mxu0 %v465
  %604 = vmatprep.subr.bf16.mxu0 0
  %605 = vmatpush1.bf16.msra.mxu0 %v466
  %606 = vmatprep.subr.bf16.mxu0 0
  %607 = vmatpush1.bf16.msra.mxu0 %v467
  %608 = vmatprep.subr.bf16.mxu0 0
  %609 = vmatpush1.bf16.msra.mxu0 %v468
  %610 = vmatprep.subr.bf16.mxu0 0
  %611 = vmatpush1.bf16.msra.mxu0 %v469
  %612 = vmatprep.subr.bf16.mxu0 0
  %613 = vmatpush1.bf16.msra.mxu0 %v470
  %614 = vmatprep.subr.bf16.mxu0 0
  %615 = vmatpush1.bf16.msra.mxu0 %v471
  %616 = vmatprep.mubr.bf16.mxu0 %v185
  %617 = vmatmul.mubr.bf16.gmra.mrb[0].mxu0 %v184
  %v618 = vpop.f32.mrb[0].mxu0
  %v619 = vadd.f32 %v170, %v618
  %v620 = vpop.f32.mrb[0].mxu0
  %v621 = vpop.f32.mrb[0].mxu0
  %v622 = vpop.f32.mrb[0].mxu0
  %623 = vdwg.mxu0
  %624 = vmatprep.subr.bf16.mxu0 0
  %625 = vmatpush1.bf16.msra.mxu0 %v472
  %626 = vmatprep.subr.bf16.mxu0 0
  %627 = vmatpush1.bf16.msra.mxu0 %v473
  %628 = vmatprep.subr.bf16.mxu0 0
  %629 = vmatpush1.bf16.msra.mxu0 %v474
  %630 = vmatprep.subr.bf16.mxu0 0
  %631 = vmatpush1.bf16.msra.mxu0 %v475
  %632 = vmatprep.subr.bf16.mxu0 0
  %633 = vmatpush1.bf16.msra.mxu0 %v476
  %634 = vmatprep.subr.bf16.mxu0 0
  %635 = vmatpush1.bf16.msra.mxu0 %v477
  %636 = vmatprep.subr.bf16.mxu0 0
  %637 = vmatpush1.bf16.msra.mxu0 %v478
  %638 = vmatprep.subr.bf16.mxu0 0
  %639 = vmatpush1.bf16.msra.mxu0 %v479
  %640 = vmatprep.subr.bf16.mxu0 0
  %641 = vmatpush1.bf16.msra.mxu0 %v480
  %642 = vmatprep.subr.bf16.mxu0 0
  %643 = vmatpush1.bf16.msra.mxu0 %v481
  %644 = vmatprep.subr.bf16.mxu0 0
  %645 = vmatpush1.bf16.msra.mxu0 %v482
  %646 = vmatprep.subr.bf16.mxu0 0
  %647 = vmatpush1.bf16.msra.mxu0 %v483
  %648 = vmatprep.subr.bf16.mxu0 0
  %649 = vmatpush1.bf16.msra.mxu0 %v484
  %650 = vmatprep.subr.bf16.mxu0 0
  %651 = vmatpush1.bf16.msra.mxu0 %v485
  %652 = vmatprep.subr.bf16.mxu0 0
  %653 = vmatpush1.bf16.msra.mxu0 %v486
  %654 = vmatprep.subr.bf16.mxu0 0
  %655 = vmatpush1.bf16.msra.mxu0 %v487
  %656 = vmatprep.mubr.bf16.mxu0 %v187
  %657 = vmatmul.mubr.bf16.gmra.mrb[0].mxu0 %v186
  %v658 = vpop.f32.mrb[0].mxu0
  %v659 = vadd.f32 %v619, %v658
  %v660 = vpop.f32.mrb[0].mxu0
  %v661 = vpop.f32.mrb[0].mxu0
  %v662 = vpop.f32.mrb[0].mxu0
  %663 = vdwg.mxu0
  %664 = vmatprep.subr.bf16.mxu0 0
  %665 = vmatpush1.bf16.msra.mxu0 %v488
  %666 = vmatprep.subr.bf16.mxu0 0
  %667 = vmatpush1.bf16.msra.mxu0 %v489
  %668 = vmatprep.subr.bf16.mxu0 0
  %669 = vmatpush1.bf16.msra.mxu0 %v490
  %670 = vmatprep.subr.bf16.mxu0 0
  %671 = vmatpush1.bf16.msra.mxu0 %v491
  %672 = vmatprep.subr.bf16.mxu0 0
  %673 = vmatpush1.bf16.msra.mxu0 %v492
  %674 = vmatprep.subr.bf16.mxu0 0
  %675 = vmatpush1.bf16.msra.mxu0 %v493
  %676 = vmatprep.subr.bf16.mxu0 0
  %677 = vmatpush1.bf16.msra.mxu0 %v494
  %678 = vmatprep.subr.bf16.mxu0 0
  %679 = vmatpush1.bf16.msra.mxu0 %v495
  %680 = vmatprep.subr.bf16.mxu0 0
  %681 = vmatpush1.bf16.msra.mxu0 %v496
  %682 = vmatprep.subr.bf16.mxu0 0
  %683 = vmatpush1.bf16.msra.mxu0 %v497
  %684 = vmatprep.subr.bf16.mxu0 0
  %685 = vmatpush1.bf16.msra.mxu0 %v498
  %686 = vmatprep.subr.bf16.mxu0 0
  %687 = vmatpush1.bf16.msra.mxu0 %v499
  %688 = vmatprep.subr.bf16.mxu0 0
  %689 = vmatpush1.bf16.msra.mxu0 %v500
  %690 = vmatprep.subr.bf16.mxu0 0
  %691 = vmatpush1.bf16.msra.mxu0 %v501
  %692 = vmatprep.subr.bf16.mxu0 0
  %693 = vmatpush1.bf16.msra.mxu0 %v502
  %694 = vmatprep.subr.bf16.mxu0 0
  %695 = vmatpush1.bf16.msra.mxu0 %v503
  %696 = vmatprep.mubr.bf16.mxu0 %v189
  %697 = vmatmul.mubr.bf16.gmra.mrb[0].mxu0 %v188
  %v698 = vpop.f32.mrb[0].mxu0
  %v699 = vadd.f32 %v659, %v698
  %v700 = vpop.f32.mrb[0].mxu0
  %v701 = vpop.f32.mrb[0].mxu0
  %v702 = vpop.f32.mrb[0].mxu0
  %703 = vdwg.mxu0
  %704 = vmatprep.subr.bf16.mxu0 0
  %705 = vmatpush1.bf16.msra.mxu0 %v504
  %706 = vmatprep.subr.bf16.mxu0 0
  %707 = vmatpush1.bf16.msra.mxu0 %v505
  %708 = vmatprep.subr.bf16.mxu0 0
  %709 = vmatpush1.bf16.msra.mxu0 %v506
  %710 = vmatprep.subr.bf16.mxu0 0
  %711 = vmatpush1.bf16.msra.mxu0 %v507
  %712 = vmatprep.subr.bf16.mxu0 0
  %713 = vmatpush1.bf16.msra.mxu0 %v508
  %714 = vmatprep.subr.bf16.mxu0 0
  %715 = vmatpush1.bf16.msra.mxu0 %v509
  %716 = vmatprep.subr.bf16.mxu0 0
  %717 = vmatpush1.bf16.msra.mxu0 %v510
  %718 = vmatprep.subr.bf16.mxu0 0
  %719 = vmatpush1.bf16.msra.mxu0 %v511
  %720 = vmatprep.subr.bf16.mxu0 0
  %721 = vmatpush1.bf16.msra.mxu0 %v512
  %722 = vmatprep.subr.bf16.mxu0 0
  %723 = vmatpush1.bf16.msra.mxu0 %v513
  %724 = vmatprep.subr.bf16.mxu0 0
  %725 = vmatpush1.bf16.msra.mxu0 %v514
  %726 = vmatprep.subr.bf16.mxu0 0
  %727 = vmatpush1.bf16.msra.mxu0 %v515
  %728 = vmatprep.subr.bf16.mxu0 0
  %729 = vmatpush1.bf16.msra.mxu0 %v516
  %730 = vmatprep.subr.bf16.mxu0 0
  %731 = vmatpush1.bf16.msra.mxu0 %v517
  %732 = vmatprep.subr.bf16.mxu0 0
  %733 = vmatpush1.bf16.msra.mxu0 %v518
  %734 = vmatprep.subr.bf16.mxu0 0
  %735 = vmatpush1.bf16.msra.mxu0 %v519
  %736 = vmatprep.mubr.bf16.mxu0 %v191
  %737 = vmatmul.mubr.bf16.gmra.mrb[0].mxu0 %v190
  %v738 = vpop.f32.mrb[0].mxu0
  %v739 = vadd.f32 %v699, %v738
  %v740 = vpop.f32.mrb[0].mxu0
  %v741 = vpop.f32.mrb[0].mxu0
  %v742 = vpop.f32.mrb[0].mxu0
  %743 = vdwg.mxu0
  %v744 = vld [vmem:[#allocation2] sm:$0xff]
  %v745 = vpack.c.bf16 %v739, %v739
  %v746 = vld [vmem:[%s3] sm:$0xf]
  %v747 = vld [vmem:[%s3 + $0x4] sm:$0xf]
  %v748 = vld [vmem:[%s3 + $0x8] sm:$0xf]
  %v749 = vld [vmem:[%s3 + $0xc] sm:$0xf]
  %v754 = vunpack.c.l.b16 %v746
  %v755 = vunpack.c.l.b16 %v747
  %v756 = vunpack.c.l.b16 %v748
  %v757 = vunpack.c.l.b16 %v749
  %v758 = vpack.c.b16 %v755, %v754
  %v759 = vpack.c.b16 %v757, %v756
  %vm762 = vcmask 261120
  %v764 = vsel %vm762, %v745, 0
  %766 = vmatprep.subr.bf16.mxu0 0
  %767 = vmatpush1.bf16.msra.mxu0 %v758
  %768 = vmatprep.subr.bf16.mxu0 0
  %769 = vmatpush1.bf16.msra.mxu0 %v759
  %770 = vmatprep.subr.bf16.mxu0 0
  %771 = vmatpush1.bf16.msra.mxu0 0
  %772 = vmatprep.subr.bf16.mxu0 0
  %773 = vmatpush1.bf16.msra.mxu0 0
  %774 = vmatprep.subr.bf16.mxu0 0
  %775 = vmatpush1.bf16.msra.mxu0 0
  %776 = vmatprep.subr.bf16.mxu0 0
  %777 = vmatpush1.bf16.msra.mxu0 0
  %778 = vmatprep.subr.bf16.mxu0 0
  %779 = vmatpush1.bf16.msra.mxu0 0
  %780 = vmatprep.subr.bf16.mxu0 0
  %781 = vmatpush1.bf16.msra.mxu0 0
  %782 = vmatprep.subr.bf16.mxu0 0
  %783 = vmatpush1.bf16.msra.mxu0 0
  %784 = vmatprep.subr.bf16.mxu0 0
  %785 = vmatpush1.bf16.msra.mxu0 0
  %786 = vmatprep.subr.bf16.mxu0 0
  %787 = vmatpush1.bf16.msra.mxu0 0
  %788 = vmatprep.subr.bf16.mxu0 0
  %789 = vmatpush1.bf16.msra.mxu0 0
  %790 = vmatprep.subr.bf16.mxu0 0
  %791 = vmatpush1.bf16.msra.mxu0 0
  %792 = vmatprep.subr.bf16.mxu0 0
  %793 = vmatpush1.bf16.msra.mxu0 0
  %794 = vmatprep.subr.bf16.mxu0 0
  %795 = vmatpush1.bf16.msra.mxu0 0
  %796 = vmatprep.subr.bf16.mxu0 0
  %797 = vmatpush1.bf16.msra.mxu0 0
  %798 = vmatprep.mubr.bf16.mxu0 0
  %799 = vmatmul.mubr.bf16.gmra.mrb[0].mxu0 %v764
  %v800 = vpop.f32.mrb[0].mxu0
  %v801 = vadd.f32 0.0, %v800
  %v802 = vpop.f32.mrb[0].mxu0
  %v803 = vpop.f32.mrb[0].mxu0
  %v804 = vpop.f32.mrb[0].mxu0
  %805 = vdwg.mxu0
  %v806 = vadd.f32 %v744, %v801
  %807 = vst [vmem:[#allocation2] sm:$0xff] %v806
  // Predicated region
  $region26: #{lyft_multi_model_forward.1} parent=0 // pred_check
    %p808 = pneg %p21
  $region27: #{lyft_multi_model_forward.1} parent=0 // pred_check_branch
    %810 = sbr.rel (%p808) target = $region29
  $region28: #{lyft_multi_model_forward.1} parent=0 // pred_region
    %v811 = vld [vmem:[#allocation2] sm:$0xff]
    %812 = vst [vmem:[%s5] sm:$0xff] %v811
  $region29: #{lyft_multi_model_forward.1} parent=0 // pred_fallthru
    _
  // Predicated region
  $region30: #{lyft_multi_model_forward.1} parent=0 // pred_check
    _
  $region31: #{lyft_multi_model_forward.1} parent=0 // pred_check_branch
    %814 = sbr.rel (0) target = $region33
  $region32: #{lyft_multi_model_forward.1} parent=0 // pred_region
    _
  $region33: #{lyft_multi_model_forward.1} parent=0 // pred_fallthru
    _
  // Predicated region
  $region34: #{lyft_multi_model_forward.1} parent=0 // pred_check
    _
  $region35: #{lyft_multi_model_forward.1} parent=0 // pred_check_branch
    %816 = sbr.rel (0) target = $region37
  $region36: #{lyft_multi_model_forward.1} parent=0 // pred_region
    _
  $region37: #{lyft_multi_model_forward.1} parent=0 // pred_fallthru
    _

</llo_original>
